<compile_context>
chip_gen: v7x
topology: tpu7x:2x2x1
jax: 0.10.0
libtpu: 0.0.40
codegen_flags: <defaults>
</compile_context>

<pallas_src>
import jax
import jax.numpy as jnp
from jax.experimental import pallas as pl
from jax.experimental.pallas import tpu as pltpu


def _round_up(x, m):
    return ((x + m - 1) // m) * m


def _iris_mlp_kernel(x_ref, w1t_ref, b1_ref, w2t_ref, b2_ref, o_ref):
    # x_ref: (4, TB) bf16 -> upcast to f32 right away (v5e has no bf16 VPU).
    xt = x_ref[...].astype(jnp.float32)                       # (4, TB)

    # Layer 1: hT = W1^T @ xT + b1 -> ReLU.   (10,4)@(4,TB) -> (10,TB)
    h = jnp.dot(w1t_ref[...], xt, preferred_element_type=jnp.float32)
    h = jnp.maximum(h + b1_ref[...], 0.0)

    # Layer 2: logitsT = W2^T @ hT + b2.      (3,10)@(10,TB) -> (3,TB)
    logits = jnp.dot(w2t_ref[...], h, preferred_element_type=jnp.float32)
    logits = logits + b2_ref[...]

    # Softmax over the 3 class rows, explicit elementwise (stays on the VPU:
    # no cross-lane XLU reduction needed since classes sit on sublanes).
    r0 = logits[0:1, :]
    r1 = logits[1:2, :]
    r2 = logits[2:3, :]
    m = jnp.maximum(jnp.maximum(r0, r1), r2)                  # (1, TB)
    e = jnp.exp(logits - m)                                   # (3, TB) EUP
    denom = e[0:1, :] + e[1:2, :] + e[2:3, :]                 # (1, TB)
    inv = pl.reciprocal(denom, approx=True)                   # EUP slot
    o_ref[...] = (e * inv).astype(o_ref.dtype)                # dense (3, TB) store


def iris_classify_forward(x, w1, b1, w2, b2, *, tb=2048):
    """x: (B, 4) f32; w1: (4,10); b1: (1,10) or (10,); w2: (10,3); b2: (1,3) or (3,).
    Returns softmax probabilities (B, 3) f32."""
    B = x.shape[0]

    # Pad batch to a lane-friendly size and pick the per-step tile TB.
    b_pad = max(_round_up(B, 128), 128)
    if b_pad > tb:
        b_pad = _round_up(b_pad, tb)
        block_b = tb
    else:
        block_b = b_pad

    # Lane-dense, bf16 input tile: (4, B_pad) with batch on lanes.
    xt = jnp.zeros((4, b_pad), dtype=jnp.bfloat16)
    xt = xt.at[:, :B].set(x.T.astype(jnp.bfloat16))

    # Transposed weights / column biases for the lane-major formulation.
    w1t = w1.T.astype(jnp.float32)                 # (10, 4)
    w2t = w2.T.astype(jnp.float32)                 # (3, 10)
    b1c = jnp.reshape(b1, (10, 1)).astype(jnp.float32)
    b2c = jnp.reshape(b2, (3, 1)).astype(jnp.float32)

    grid = (pl.cdiv(b_pad, block_b),)

    out_t = pl.pallas_call(
        _iris_mlp_kernel,
        out_shape=jax.ShapeDtypeStruct((3, b_pad), jnp.float32),
        grid=grid,
        in_specs=[
            pl.BlockSpec((4, block_b), lambda i: (0, i)),   # x tile (batch on lanes)
            pl.BlockSpec((10, 4), lambda i: (0, 0)),        # W1^T (resident)
            pl.BlockSpec((10, 1), lambda i: (0, 0)),        # b1   (resident)
            pl.BlockSpec((3, 10), lambda i: (0, 0)),        # W2^T (resident)
            pl.BlockSpec((3, 1), lambda i: (0, 0)),         # b2   (resident)
        ],
        out_specs=pl.BlockSpec((3, block_b), lambda i: (0, i)),
        compiler_params=pltpu.CompilerParams(
            dimension_semantics=("parallel",)),             # 2-TC sharding on v7x
    )(xt, w1t, b1c, w2t, b2c)

    return out_t[:, :B].T


def _reference_forward(x, w1, b1, w2, b2):
    h = jnp.maximum(x @ w1 + jnp.reshape(b1, (1, 10)), 0.0)
    logits = h @ w2 + jnp.reshape(b2, (1, 3))
    return jax.nn.softmax(logits, axis=1)


if __name__ == "__main__":
    key = jax.random.PRNGKey(0)
    k_x, k_w1, k_b1, k_w2, k_b2 = jax.random.split(key, 5)

    B = 8  # small batch; first row matches the example input [[1, 2, 3, 4]]
    x = jax.random.normal(k_x, (B, 4), dtype=jnp.float32)
    x = x.at[0].set(jnp.array([1.0, 2.0, 3.0, 4.0], dtype=jnp.float32))

    # Deterministic parameter init (PyTorch Linear-style uniform bounds).
    bound1 = 1.0 / jnp.sqrt(4.0)
    bound2 = 1.0 / jnp.sqrt(10.0)
    w1 = jax.random.uniform(k_w1, (4, 10), jnp.float32, -bound1, bound1)
    b1 = jax.random.uniform(k_b1, (1, 10), jnp.float32, -bound1, bound1)
    w2 = jax.random.uniform(k_w2, (10, 3), jnp.float32, -bound2, bound2)
    b2 = jax.random.uniform(k_b2, (1, 3), jnp.float32, -bound2, bound2)

    out = iris_classify_forward(x, w1, b1, w2, b2)
    out = jax.block_until_ready(out)

    # Reference on the same bf16-rounded input the kernel consumes.
    x_bf = x.astype(jnp.bfloat16).astype(jnp.float32)
    ref = _reference_forward(x_bf, w1, b1, w2, b2)

    assert out.shape == (B, 3)
    assert jnp.allclose(out, ref, atol=2e-3, rtol=2e-3), "mismatch vs reference"
    assert jnp.allclose(jnp.sum(out, axis=1), 1.0, atol=5e-3)

    # Exercise the multi-step (pipelined) grid path with a tiny tile size.
    B2 = 300
    x2 = jax.random.normal(jax.random.PRNGKey(1), (B2, 4), dtype=jnp.float32)
    out2 = jax.block_until_ready(
        iris_classify_forward(x2, w1, b1, w2, b2, tb=128))
    ref2 = _reference_forward(x2.astype(jnp.bfloat16).astype(jnp.float32),
                              w1, b1, w2, b2)
    assert out2.shape == (B2, 3)
    assert jnp.allclose(out2, ref2, atol=2e-3, rtol=2e-3), "mismatch (gridded)"

    print("KERNEL_OK")
</pallas_src>

<mosaic_0001>
module attributes {stable_mosaic.version = 11 : i64} {
  func.func @_iris_mlp_kernel(%arg0: i32, %arg1: memref<4x128xbf16, #tpu.memory_space<vmem>>, %arg2: memref<10x4xf32, #tpu.memory_space<vmem>>, %arg3: memref<10x1xf32, #tpu.memory_space<vmem>>, %arg4: memref<3x10xf32, #tpu.memory_space<vmem>>, %arg5: memref<3x1xf32, #tpu.memory_space<vmem>>, %arg6: memref<3x128xf32, #tpu.memory_space<vmem>>) attributes {dimension_semantics = [#tpu.dimension_semantics<parallel>], iteration_bounds = array<i64: 1>, scalar_prefetch = 0 : i64, scratch_operands = 0 : i64, tpu.core_type = #tpu.core_type<tc>, window_params = [{transform_indices = @transform_0, window_bounds = array<i64: 4, 128>}, {pipeline_mode = #tpu.pipeline_mode<synchronous>, transform_indices = @transform_1, window_bounds = array<i64: 10, 4>}, {pipeline_mode = #tpu.pipeline_mode<synchronous>, transform_indices = @transform_2, window_bounds = array<i64: 10, 1>}, {pipeline_mode = #tpu.pipeline_mode<synchronous>, transform_indices = @transform_3, window_bounds = array<i64: 3, 10>}, {pipeline_mode = #tpu.pipeline_mode<synchronous>, transform_indices = @transform_4, window_bounds = array<i64: 3, 1>}, {transform_indices = @transform_5, window_bounds = array<i64: 3, 128>}]} {
    %c0 = arith.constant 0 : index
    %c0_0 = arith.constant 0 : index
    %0 = vector.load %arg1[%c0, %c0_0] : memref<4x128xbf16, #tpu.memory_space<vmem>>, vector<4x128xbf16>
    %1 = arith.extf %0 : vector<4x128xbf16> to vector<4x128xf32>
    %c0_1 = arith.constant 0 : index
    %c0_2 = arith.constant 0 : index
    %2 = vector.load %arg2[%c0_1, %c0_2] : memref<10x4xf32, #tpu.memory_space<vmem>>, vector<10x4xf32>
    %cst = arith.constant dense<0.000000e+00> : vector<10x128xf32>
    %3 = tpu.matmul %2, %1, %cst {dimension_numbers = #tpu.dot_dimension_numbers<[1], [0], [0], [1], [0, 0, 1, 1], [], []>} : vector<10x4xf32>, vector<4x128xf32>, vector<10x128xf32> -> vector<10x128xf32>
    %c0_3 = arith.constant 0 : index
    %c0_4 = arith.constant 0 : index
    %4 = vector.load %arg3[%c0_3, %c0_4] : memref<10x1xf32, #tpu.memory_space<vmem>>, vector<10x1xf32>
    %5 = vector.broadcast %4 : vector<10x1xf32> to vector<10x128xf32>
    %6 = arith.addf %3, %5 : vector<10x128xf32>
    %cst_5 = arith.constant 0.000000e+00 : f32
    %7 = vector.broadcast %cst_5 : f32 to vector<10x128xf32>
    %8 = arith.maximumf %6, %7 : vector<10x128xf32>
    %c0_6 = arith.constant 0 : index
    %c0_7 = arith.constant 0 : index
    %9 = vector.load %arg4[%c0_6, %c0_7] : memref<3x10xf32, #tpu.memory_space<vmem>>, vector<3x10xf32>
    %cst_8 = arith.constant dense<0.000000e+00> : vector<3x128xf32>
    %10 = tpu.matmul %9, %8, %cst_8 {dimension_numbers = #tpu.dot_dimension_numbers<[1], [0], [0], [1], [0, 0, 1, 1], [], []>} : vector<3x10xf32>, vector<10x128xf32>, vector<3x128xf32> -> vector<3x128xf32>
    %c0_9 = arith.constant 0 : index
    %c0_10 = arith.constant 0 : index
    %11 = vector.load %arg5[%c0_9, %c0_10] : memref<3x1xf32, #tpu.memory_space<vmem>>, vector<3x1xf32>
    %12 = vector.broadcast %11 : vector<3x1xf32> to vector<3x128xf32>
    %13 = arith.addf %10, %12 : vector<3x128xf32>
    %14 = vector.extract_strided_slice %13 {offsets = [0, 0], sizes = [1, 128], strides = [1, 1]} : vector<3x128xf32> to vector<1x128xf32>
    %15 = vector.extract_strided_slice %13 {offsets = [1, 0], sizes = [1, 128], strides = [1, 1]} : vector<3x128xf32> to vector<1x128xf32>
    %16 = vector.extract_strided_slice %13 {offsets = [2, 0], sizes = [1, 128], strides = [1, 1]} : vector<3x128xf32> to vector<1x128xf32>
    %17 = arith.maximumf %14, %15 : vector<1x128xf32>
    %18 = arith.maximumf %17, %16 : vector<1x128xf32>
    %19 = vector.broadcast %18 : vector<1x128xf32> to vector<3x128xf32>
    %20 = arith.subf %13, %19 : vector<3x128xf32>
    %21 = math.exp %20 : vector<3x128xf32>
    %22 = vector.extract_strided_slice %21 {offsets = [0, 0], sizes = [1, 128], strides = [1, 1]} : vector<3x128xf32> to vector<1x128xf32>
    %23 = vector.extract_strided_slice %21 {offsets = [1, 0], sizes = [1, 128], strides = [1, 1]} : vector<3x128xf32> to vector<1x128xf32>
    %24 = arith.addf %22, %23 : vector<1x128xf32>
    %25 = vector.extract_strided_slice %21 {offsets = [2, 0], sizes = [1, 128], strides = [1, 1]} : vector<3x128xf32> to vector<1x128xf32>
    %26 = arith.addf %24, %25 : vector<1x128xf32>
    %27 = tpu.reciprocal %26 {approx = true} : vector<1x128xf32> -> vector<1x128xf32>
    %28 = vector.broadcast %27 : vector<1x128xf32> to vector<3x128xf32>
    %29 = arith.mulf %21, %28 : vector<3x128xf32>
    %c0_11 = arith.constant 0 : index
    %c0_12 = arith.constant 0 : index
    %30 = vector.load %arg6[%c0_11, %c0_12] : memref<3x128xf32, #tpu.memory_space<vmem>>, vector<3x128xf32>
    tpu.vector_store %arg6[%c0_11, %c0_12], %29 {strides = array<i32>} : memref<3x128xf32, #tpu.memory_space<vmem>>, vector<3x128xf32>,
    return
  }
  func.func @transform_0(%arg0: i32) -> (i32, i32) {
    %c0_i32 = arith.constant 0 : i32
    %c0_i32_0 = arith.constant 0 : i32
    return %c0_i32, %arg0 : i32, i32
  }
  func.func @transform_1(%arg0: i32) -> (i32, i32) {
    %c0_i32 = arith.constant 0 : i32
    %c0_i32_0 = arith.constant 0 : i32
    %c0_i32_1 = arith.constant 0 : i32
    return %c0_i32, %c0_i32_0 : i32, i32
  }
  func.func @transform_2(%arg0: i32) -> (i32, i32) {
    %c0_i32 = arith.constant 0 : i32
    %c0_i32_0 = arith.constant 0 : i32
    %c0_i32_1 = arith.constant 0 : i32
    return %c0_i32, %c0_i32_0 : i32, i32
  }
  func.func @transform_3(%arg0: i32) -> (i32, i32) {
    %c0_i32 = arith.constant 0 : i32
    %c0_i32_0 = arith.constant 0 : i32
    %c0_i32_1 = arith.constant 0 : i32
    return %c0_i32, %c0_i32_0 : i32, i32
  }
  func.func @transform_4(%arg0: i32) -> (i32, i32) {
    %c0_i32 = arith.constant 0 : i32
    %c0_i32_0 = arith.constant 0 : i32
    %c0_i32_1 = arith.constant 0 : i32
    return %c0_i32, %c0_i32_0 : i32, i32
  }
  func.func @transform_5(%arg0: i32) -> (i32, i32) {
    %c0_i32 = arith.constant 0 : i32
    %c0_i32_0 = arith.constant 0 : i32
    return %c0_i32, %arg0 : i32, i32
  }
}

</mosaic_0001>

<llo_original>
// kernel: tpu_custom_call.1
$region0: #{tpu_custom_call.1}
  #allocation0 [shape = 'u32[]', space=smem, size = 0x4, offset = 0x4, fixed_abs, tag = 'smem constant byte address 0x4 - core index']
  #allocation1 [shape = 'u32[144,128]{1,0:T(1,128)}', space=vmem, size = 0x12000, scoped, tag = 'internal scratch']
  %s0 = inlined_call_operand.vmem [shape: bf16[4,128], index: 0, kind: input, shape index: {}]
  %s1 = inlined_call_operand.vmem [shape: f32[10,4], index: 1, kind: input, shape index: {}]
  %s2 = inlined_call_operand.vmem [shape: f32[10,1], index: 2, kind: input, shape index: {}]
  %s3 = inlined_call_operand.vmem [shape: f32[3,10], index: 3, kind: input, shape index: {}]
  %s4 = inlined_call_operand.vmem [shape: f32[3,1], index: 4, kind: input, shape index: {}]
  %s5 = inlined_call_operand.hbm [shape: f32[3,128], index: 5, kind: output, shape index: {}]
  %s6 = sld [smem:[#allocation0]]
  $region30: #{tpu_custom_call.1} parent=0
    _
  %s8 = ssub.s32 1, %s6
  %s9 = scalar_select 0, %s8, %s6
  $region1: #{tpu_custom_call.1} parent=0
    #allocation2 [shape = 'u8[2048]{0}', space=vmem, size = 0x800, scoped, tag = 'output window, operand 0, single buffered']
    #allocation3 [shape = 's32[1]{0}', space=sflag, size = 0x4, scoped, tag = 'scoped memory for tpu_custom_call.1']
    %10 = vsyncpa [#allocation3], 0
    // Predicated region
    $region2: #{tpu_custom_call.1} parent=1 // pred_check
      _
    $region3: #{tpu_custom_call.1} parent=1 // pred_check_branch
      %12 = sbr.rel (0) target = $region5
    $region4: #{tpu_custom_call.1} parent=1 // pred_region
      _
    $region5: #{tpu_custom_call.1} parent=1 // pred_fallthru
      _
    // Predicated region
    $region6: #{tpu_custom_call.1} parent=1 // pred_check
      _
    $region7: #{tpu_custom_call.1} parent=1 // pred_check_branch
      %14 = sbr.rel (0) target = $region9
    $region8: #{tpu_custom_call.1} parent=1 // pred_region
      _
    $region9: #{tpu_custom_call.1} parent=1 // pred_fallthru
      _
    // Predicated region
    $region10: #{tpu_custom_call.1} parent=1 // pred_check
      _
    $region11: #{tpu_custom_call.1} parent=1 // pred_check_branch
      %16 = sbr.rel (0) target = $region13
    $region12: #{tpu_custom_call.1} parent=1 // pred_region
      _
    $region13: #{tpu_custom_call.1} parent=1 // pred_fallthru
      _
    // Predicated region
    $region14: #{tpu_custom_call.1} parent=1 // pred_check
      _
    $region15: #{tpu_custom_call.1} parent=1 // pred_check_branch
      %18 = sbr.rel (0) target = $region17
    $region16: #{tpu_custom_call.1} parent=1 // pred_region
      _
    $region17: #{tpu_custom_call.1} parent=1 // pred_fallthru
      _
    // Predicated region
    $region18: #{tpu_custom_call.1} parent=1 // pred_check
      _
    $region19: #{tpu_custom_call.1} parent=1 // pred_check_branch
      %20 = sbr.rel (0) target = $region21
    $region20: #{tpu_custom_call.1} parent=1 // pred_region
      _
    $region21: #{tpu_custom_call.1} parent=1 // pred_fallthru
      _
    %v21 = vld [vmem:[%s0] sm:$0x3]
    %v22 = vunpack.c.l.bf16 %v21
    %v23 = vld [vmem:[%s1] sm:$0xff]
    %v24 = vld [vmem:[%s1 + $0x8] sm:$0x3]
    %v25 = vld [vmem:[%s2] sm:$0xff]
    %v26 = vld [vmem:[%s2 + $0x8] sm:$0x3]
    %28 = vset.pattern.permute.xlu0 0
    %29 = vperm.xlu0 %28, %v25
    %v30 = vpop.permute.xlu0 %29
    %33 = vset.pattern.permute.xlu0 0
    %34 = vperm.xlu0 %33, %v26
    %v35 = vpop.permute.xlu0 %34
    %vm37 = vcmask 31744
    %v39 = vsel %vm37, %v23, 0
    %v42 = vsel %vm37, %v24, 0
    %vm44 = vcmask 1043456
    %v46 = vsel %vm44, %v22, 0
    %48 = vmatprep.subr.mxu0 0.0
    %49 = vmatpush1.msra.mxu0 %v46
    %50 = vmatprep.subr.mxu0 0.0
    %51 = vmatpush1.msra.mxu0 0.0
    %52 = vmatprep.subr.mxu0 0.0
    %53 = vmatpush1.msra.mxu0 0.0
    %54 = vmatprep.subr.mxu0 0.0
    %55 = vmatpush1.msra.mxu0 0.0
    %56 = vmatprep.subr.mxu0 0.0
    %57 = vmatpush1.msra.mxu0 0.0
    %58 = vmatprep.subr.mxu0 0.0
    %59 = vmatpush1.msra.mxu0 0.0
    %60 = vmatprep.subr.mxu0 0.0
    %61 = vmatpush1.msra.mxu0 0.0
    %62 = vmatprep.subr.mxu0 0.0
    %63 = vmatpush1.msra.mxu0 0.0
    %64 = vmatprep.subr.mxu0 0.0
    %65 = vmatpush1.msra.mxu0 0.0
    %66 = vmatprep.subr.mxu0 0.0
    %67 = vmatpush1.msra.mxu0 0.0
    %68 = vmatprep.subr.mxu0 0.0
    %69 = vmatpush1.msra.mxu0 0.0
    %70 = vmatprep.subr.mxu0 0.0
    %71 = vmatpush1.msra.mxu0 0.0
    %72 = vmatprep.subr.mxu0 0.0
    %73 = vmatpush1.msra.mxu0 0.0
    %74 = vmatprep.subr.mxu0 0.0
    %75 = vmatpush1.msra.mxu0 0.0
    %76 = vmatprep.subr.mxu0 0.0
    %77 = vmatpush1.msra.mxu0 0.0
    %78 = vmatprep.subr.mxu0 0.0
    %79 = vmatpush1.msra.mxu0 0.0
    %80 = vmatprep.subr.mxu0 0.0
    %81 = vmatpush1.msra.mxu0 0.0
    %82 = vmatprep.subr.mxu0 0.0
    %83 = vmatpush1.msra.mxu0 0.0
    %84 = vmatprep.subr.mxu0 0.0
    %85 = vmatpush1.msra.mxu0 0.0
    %86 = vmatprep.subr.mxu0 0.0
    %87 = vmatpush1.msra.mxu0 0.0
    %88 = vmatprep.subr.mxu0 0.0
    %89 = vmatpush1.msra.mxu0 0.0
    %90 = vmatprep.subr.mxu0 0.0
    %91 = vmatpush1.msra.mxu0 0.0
    %92 = vmatprep.subr.mxu0 0.0
    %93 = vmatpush1.msra.mxu0 0.0
    %94 = vmatprep.subr.mxu0 0.0
    %95 = vmatpush1.msra.mxu0 0.0
    %96 = vmatprep.subr.mxu0 0.0
    %97 = vmatpush1.msra.mxu0 0.0
    %98 = vmatprep.subr.mxu0 0.0
    %99 = vmatpush1.msra.mxu0 0.0
    %100 = vmatprep.subr.mxu0 0.0
    %101 = vmatpush1.msra.mxu0 0.0
    %102 = vmatprep.subr.mxu0 0.0
    %103 = vmatpush1.msra.mxu0 0.0
    %104 = vmatprep.subr.mxu0 0.0
    %105 = vmatpush1.msra.mxu0 0.0
    %106 = vmatprep.subr.mxu0 0.0
    %107 = vmatpush1.msra.mxu0 0.0
    %108 = vmatprep.subr.mxu0 0.0
    %109 = vmatpush1.msra.mxu0 0.0
    %110 = vmatprep.subr.mxu0 0.0
    %111 = vmatpush1.msra.mxu0 0.0
    %112 = vmatprep.mubr.f32.mxu0 0.0
    %113 = vmatmul.mubr.f32.gmra.mrb[0].mxu0 %v39
    %v114 = vpop.f32.mrb[0].mxu0
    %v115 = vadd.f32 %v30, %v114
    %v116 = vpop.f32.mrb[0].mxu0
    %117 = vmatprep.mubr.f32.mxu0 0.0
    %118 = vmatmul.mubr.f32.gmra.mrb[0].mxu0 %v42
    %v119 = vpop.f32.mrb[0].mxu0
    %v120 = vadd.f32 %v35, %v119
    %v121 = vpop.f32.mrb[0].mxu0
    %122 = vdwg.mxu0
    %v123 = vmax.f32 %v115, 0.0
    %v124 = vmax.f32 %v120, 0.0
    %v125 = vld [vmem:[%s3] sm:$0x7]
    %v126 = vld [vmem:[%s4] sm:$0x7]
    %128 = vset.pattern.permute.xlu0 0
    %129 = vperm.xlu0 %128, %v126
    %v130 = vpop.permute.xlu0 %129
    %vm132 = vcmask 80896
    %v134 = vsel %vm132, %v125, 0
    %vm136 = vcmask 1041408
    %v138 = vsel %vm136, %v124, 0
    %140 = vmatprep.subr.mxu0 0.0
    %141 = vmatpush1.msra.mxu0 %v123
    %142 = vmatprep.subr.mxu0 0.0
    %143 = vmatpush1.msra.mxu0 %v138
    %144 = vmatprep.subr.mxu0 0.0
    %145 = vmatpush1.msra.mxu0 0.0
    %146 = vmatprep.subr.mxu0 0.0
    %147 = vmatpush1.msra.mxu0 0.0
    %148 = vmatprep.subr.mxu0 0.0
    %149 = vmatpush1.msra.mxu0 0.0
    %150 = vmatprep.subr.mxu0 0.0
    %151 = vmatpush1.msra.mxu0 0.0
    %152 = vmatprep.subr.mxu0 0.0
    %153 = vmatpush1.msra.mxu0 0.0
    %154 = vmatprep.subr.mxu0 0.0
    %155 = vmatpush1.msra.mxu0 0.0
    %156 = vmatprep.subr.mxu0 0.0
    %157 = vmatpush1.msra.mxu0 0.0
    %158 = vmatprep.subr.mxu0 0.0
    %159 = vmatpush1.msra.mxu0 0.0
    %160 = vmatprep.subr.mxu0 0.0
    %161 = vmatpush1.msra.mxu0 0.0
    %162 = vmatprep.subr.mxu0 0.0
    %163 = vmatpush1.msra.mxu0 0.0
    %164 = vmatprep.subr.mxu0 0.0
    %165 = vmatpush1.msra.mxu0 0.0
    %166 = vmatprep.subr.mxu0 0.0
    %167 = vmatpush1.msra.mxu0 0.0
    %168 = vmatprep.subr.mxu0 0.0
    %169 = vmatpush1.msra.mxu0 0.0
    %170 = vmatprep.subr.mxu0 0.0
    %171 = vmatpush1.msra.mxu0 0.0
    %172 = vmatprep.subr.mxu0 0.0
    %173 = vmatpush1.msra.mxu0 0.0
    %174 = vmatprep.subr.mxu0 0.0
    %175 = vmatpush1.msra.mxu0 0.0
    %176 = vmatprep.subr.mxu0 0.0
    %177 = vmatpush1.msra.mxu0 0.0
    %178 = vmatprep.subr.mxu0 0.0
    %179 = vmatpush1.msra.mxu0 0.0
    %180 = vmatprep.subr.mxu0 0.0
    %181 = vmatpush1.msra.mxu0 0.0
    %182 = vmatprep.subr.mxu0 0.0
    %183 = vmatpush1.msra.mxu0 0.0
    %184 = vmatprep.subr.mxu0 0.0
    %185 = vmatpush1.msra.mxu0 0.0
    %186 = vmatprep.subr.mxu0 0.0
    %187 = vmatpush1.msra.mxu0 0.0
    %188 = vmatprep.subr.mxu0 0.0
    %189 = vmatpush1.msra.mxu0 0.0
    %190 = vmatprep.subr.mxu0 0.0
    %191 = vmatpush1.msra.mxu0 0.0
    %192 = vmatprep.subr.mxu0 0.0
    %193 = vmatpush1.msra.mxu0 0.0
    %194 = vmatprep.subr.mxu0 0.0
    %195 = vmatpush1.msra.mxu0 0.0
    %196 = vmatprep.subr.mxu0 0.0
    %197 = vmatpush1.msra.mxu0 0.0
    %198 = vmatprep.subr.mxu0 0.0
    %199 = vmatpush1.msra.mxu0 0.0
    %200 = vmatprep.subr.mxu0 0.0
    %201 = vmatpush1.msra.mxu0 0.0
    %202 = vmatprep.subr.mxu0 0.0
    %203 = vmatpush1.msra.mxu0 0.0
    %204 = vmatprep.mubr.f32.mxu0 0.0
    %205 = vmatmul.mubr.f32.gmra.mrb[0].mxu0 %v134
    %v206 = vpop.f32.mrb[0].mxu0
    %v207 = vadd.f32 %v130, %v206
    %v208 = vpop.f32.mrb[0].mxu0
    %209 = vdwg.mxu0
    %v211 = vrot.slane %v207, 1
    %v213 = vmax.f32 %v207, %v211
    %v214 = vrot.slane %v207, 2
    %v216 = vmax.f32 %v213, %v214
    %v217 = vlaneseq
    %v218 = vshrl.u32 %v217, 7
    %v219 = vsub.s32 0, %v218
    %v220 = vrot.slane %v216, %v219
    %v221 = vsub.f32 %v207, %v220
    %v222 = vmul.f32 %v221, 1.442695
    %v223 = vpow.pop %v222
    %v225 = vrot.slane %v223, 1
    %v227 = vadd.f32 %v223, %v225
    %v228 = vrot.slane %v223, 2
    %v230 = vadd.f32 %v227, %v228
    %v231 = vrcp.pop %v230
    %v232 = vlaneseq
    %v233 = vshrl.u32 %v232, 7
    %v234 = vsub.s32 0, %v233
    %v235 = vrot.slane %v231, %v234
    %v236 = vmul.f32 %v223, %v235
    %237 = vst [vmem:[#allocation2] sm:$0x7] %v236
    // Predicated region
    $region22: #{tpu_custom_call.1} parent=1 // pred_check
      _
    $region23: #{tpu_custom_call.1} parent=1 // pred_check_branch
      %239 = sbr.rel (0) target = $region25
    $region24: #{tpu_custom_call.1} parent=1 // pred_region
      %s241 = ssub.s32 64, 64
      %242 = vsyncadd [#allocation3], %s241
      %s244 = sshll.u32 [#allocation2], 4
      %s245 = int_to_ptr.vmem [resolvable:$true] %s244
      %247 = dma.vmem_to_hbm [thread:$0]  %s245, 64, %s5, [#allocation3]
    $region25: #{tpu_custom_call.1} parent=1 // pred_fallthru
      _
    // Predicated region
    $region26: #{tpu_custom_call.1} parent=1 // pred_check
      _
    $region27: #{tpu_custom_call.1} parent=1 // pred_check_branch
      %249 = sbr.rel (0) target = $region29
    $region28: #{tpu_custom_call.1} parent=1 // pred_region
      %250 = dma.done [#allocation3], 64
    $region29: #{tpu_custom_call.1} parent=1 // pred_fallthru
      _
    %251 = vsyncpa [#allocation3], 1

</llo_original>
